<compile_context>
chip_gen: v7x
topology: tpu7x:2x2x1
jax: 0.10.0
libtpu: 0.0.40
codegen_flags: <defaults>
</compile_context>

<pallas_src>
import math

import jax
import jax.numpy as jnp
from jax.experimental import pallas as pl
from jax.experimental.pallas import tpu as pltpu


# ----------------------------------------------------------------------------
# Fused conv kernel:  [GroupNorm+Swish | Swish] -> KxK conv -> [*sent, +te, +res]
# ----------------------------------------------------------------------------
def fused_conv(x, w, b, *, pad=1, gn=None, sent=None, time=None, res=None,
               act_in=False):
    """Stride-1 KxK conv over NHWC input with optional fused pre/post ops.

    x:    (B, Hi, Wi, Cin) f32, un-padded
    w:    (KH, KW, Cin, Cout)
    b:    (Cout,)
    gn:   (gamma, beta, n_groups) -> GroupNorm + Swish applied to x before conv
    act_in: apply Swish to x before conv (used when gn is None)
    sent: (B, Ho, Wo, Cout) -> output *= sent
    time: (t_emb (B,Tc), wt (Tc,Cout), bt (Cout,)) -> output += swish(t_emb)@wt+bt
    res:  (B, Ho, Wo, Cout) -> output += res
    """
    B, Hi, Wi, Cin = x.shape
    KH, KW, _, Cout = w.shape

    # Keep the MXU contraction dim a multiple of 8 (image_proj Cin=3, sentence Cin=1).
    if Cin % 8 != 0:
        pc = 8 - Cin % 8
        x = jnp.pad(x, ((0, 0), (0, 0), (0, 0), (0, pc)))
        w = jnp.pad(w, ((0, 0), (0, 0), (0, pc), (0, 0)))
        Cin += pc

    Hp, Wp = Hi + 2 * pad, Wi + 2 * pad
    Ho, Wo = Hp - KH + 1, Wp - KW + 1
    xp = jnp.pad(x, ((0, 0), (pad, pad), (pad, pad), (0, 0))) if pad else x
    wm = w.reshape(KH * KW, Cin, Cout).astype(jnp.bfloat16)
    bv = b.reshape(1, Cout).astype(jnp.float32)

    has_gn = gn is not None
    has_sent = sent is not None
    has_time = time is not None
    has_res = res is not None
    eps = 1e-5
    if has_gn:
        gamma, beta, G = gn
        Cg = Cin // G
        gv = gamma.reshape(1, Cin).astype(jnp.float32)
        bev = beta.reshape(1, Cin).astype(jnp.float32)
        # interior mask: re-zero the normalized padding ring inside the kernel
        msk = jnp.pad(jnp.ones((1, Hi, Wi, 1), jnp.float32),
                      ((0, 0), (pad, pad), (pad, pad), (0, 0)))
    taps = [(ky, kx) for ky in range(KH) for kx in range(KW)]

    def kern(*refs):
        it = iter(refs)
        xp_ref = next(it); w_ref = next(it); b_ref = next(it)
        if has_gn:
            g_ref = next(it); be_ref = next(it); m_ref = next(it)
        if has_sent:
            s_ref = next(it)
        if has_time:
            t_ref = next(it); wt_ref = next(it); bt_ref = next(it)
        if has_res:
            r_ref = next(it)
        o_ref = next(it)

        xv = xp_ref[0].astype(jnp.float32)                     # (Hp, Wp, Cin)
        if has_gn:
            xi = xv[pad:pad + Hi, pad:pad + Wi, :].reshape(Hi * Wi, Cin)
            cnt = float(Cg * Hi * Wi)
            # group-membership matrices (Cin,G) and (G,Cin): avoids lane-split reshapes
            ch = jax.lax.broadcasted_iota(jnp.int32, (Cin, G), 0) // Cg
            gr = jax.lax.broadcasted_iota(jnp.int32, (Cin, G), 1)
            member = (ch == gr).astype(jnp.float32)
            ch_t = jax.lax.broadcasted_iota(jnp.int32, (G, Cin), 1) // Cg
            gr_t = jax.lax.broadcasted_iota(jnp.int32, (G, Cin), 0)
            member_t = (ch_t == gr_t).astype(jnp.float32)
            s1 = jnp.sum(xi, axis=0, keepdims=True)            # (1, Cin)
            mean_c = jnp.dot(
                jnp.dot(s1, member, preferred_element_type=jnp.float32) / cnt,
                member_t, preferred_element_type=jnp.float32)  # (1, Cin)
            d = xi - mean_c
            var_g = jnp.dot(jnp.sum(d * d, axis=0, keepdims=True), member,
                            preferred_element_type=jnp.float32) / cnt
            rstd_c = jnp.dot(jax.lax.rsqrt(var_g + eps), member_t,
                             preferred_element_type=jnp.float32)  # (1, Cin)
            xn = (xv - mean_c.reshape(1, 1, Cin)) * rstd_c.reshape(1, 1, Cin)
            xn = xn * g_ref[...].reshape(1, 1, Cin) + be_ref[...].reshape(1, 1, Cin)
            xn = xn * jax.nn.sigmoid(xn)                       # Swish
            xv = xn * m_ref[0]                                 # zero padding ring again
        elif act_in:
            xv = xv * jax.nn.sigmoid(xv)                       # Swish(0) == 0: pad-safe

        acc = jnp.zeros((Ho * Wo, Cout), jnp.float32)
        for tap, (ky, kx) in enumerate(taps):
            patch = xv[ky:ky + Ho, kx:kx + Wo, :].reshape(Ho * Wo, Cin)
            acc = acc + jnp.dot(patch.astype(jnp.bfloat16), w_ref[tap],
                                preferred_element_type=jnp.float32)
        y = acc + b_ref[...]
        if has_sent:
            y = y * s_ref[0].reshape(Ho * Wo, Cout)
        if has_time:
            tv = t_ref[0].astype(jnp.float32)                  # (1, Tc)
            tv = tv * jax.nn.sigmoid(tv)
            y = y + (jnp.dot(tv.astype(jnp.bfloat16), wt_ref[...],
                             preferred_element_type=jnp.float32) + bt_ref[...])
        if has_res:
            y = y + r_ref[0].reshape(Ho * Wo, Cout)
        o_ref[0] = y.reshape(Ho, Wo, Cout).astype(o_ref.dtype)

    args = [xp, wm, bv]
    in_specs = [
        pl.BlockSpec((1, Hp, Wp, Cin), lambda i: (i, 0, 0, 0)),
        pl.BlockSpec((KH * KW, Cin, Cout), lambda i: (0, 0, 0)),
        pl.BlockSpec((1, Cout), lambda i: (0, 0)),
    ]
    if has_gn:
        args += [gv, bev, msk]
        in_specs += [pl.BlockSpec((1, Cin), lambda i: (0, 0)),
                     pl.BlockSpec((1, Cin), lambda i: (0, 0)),
                     pl.BlockSpec((1, Hp, Wp, 1), lambda i: (0, 0, 0, 0))]
    if has_sent:
        args += [sent]
        in_specs += [pl.BlockSpec((1, Ho, Wo, Cout), lambda i: (i, 0, 0, 0))]
    if has_time:
        t_emb, wt, bt = time
        Tc = t_emb.shape[1]
        args += [t_emb.reshape(B, 1, Tc),
                 wt.astype(jnp.bfloat16),
                 bt.reshape(1, Cout).astype(jnp.float32)]
        in_specs += [pl.BlockSpec((1, 1, Tc), lambda i: (i, 0, 0)),
                     pl.BlockSpec((Tc, Cout), lambda i: (0, 0)),
                     pl.BlockSpec((1, Cout), lambda i: (0, 0))]
    if has_res:
        args += [res]
        in_specs += [pl.BlockSpec((1, Ho, Wo, Cout), lambda i: (i, 0, 0, 0))]

    return pl.pallas_call(
        kern,
        grid=(B,),
        in_specs=in_specs,
        out_specs=pl.BlockSpec((1, Ho, Wo, Cout), lambda i: (i, 0, 0, 0)),
        out_shape=jax.ShapeDtypeStruct((B, Ho, Wo, Cout), jnp.float32),
        compiler_params=pltpu.CompilerParams(
            dimension_semantics=("parallel",),
            vmem_limit_bytes=32 * 1024 * 1024),
    )(*args)


# ----------------------------------------------------------------------------
# Small fused linear (time / sentence embeddings)
# ----------------------------------------------------------------------------
def linear_fused(x, w, b, *, swish_in=False, swish_out=False):
    """y = [swish](x) @ w + b, optionally swish(y).  x:(M,K) w:(K,N) b:(N,)."""
    M, K = x.shape
    N = w.shape[1]

    def kern(x_ref, w_ref, b_ref, o_ref):
        xv = x_ref[...].astype(jnp.float32)
        if swish_in:
            xv = xv * jax.nn.sigmoid(xv)
        y = jnp.dot(xv.astype(jnp.bfloat16), w_ref[...],
                    preferred_element_type=jnp.float32) + b_ref[...]
        if swish_out:
            y = y * jax.nn.sigmoid(y)
        o_ref[...] = y.astype(o_ref.dtype)

    return pl.pallas_call(
        kern,
        grid=(1,),
        in_specs=[pl.BlockSpec((M, K), lambda i: (0, 0)),
                  pl.BlockSpec((K, N), lambda i: (0, 0)),
                  pl.BlockSpec((1, N), lambda i: (0, 0))],
        out_specs=pl.BlockSpec((M, N), lambda i: (0, 0)),
        out_shape=jax.ShapeDtypeStruct((M, N), jnp.float32),
        compiler_params=pltpu.CompilerParams(dimension_semantics=("arbitrary",)),
    )(x, w.astype(jnp.bfloat16), b.reshape(1, N).astype(jnp.float32))


# ----------------------------------------------------------------------------
# Attention (n_heads=1, d_k=C) over spatial positions, NHWC in/out
# ----------------------------------------------------------------------------
def attention_block(x, p):
    B, H, W, C = x.shape
    L = H * W
    xl = x.reshape(B, L, C)                              # no transpose needed (NHWC)
    wp, bp = p['proj']['w'], p['proj']['b']              # (C, 3C), (3C,)
    wq, wk, wv = wp[:, :C], wp[:, C:2 * C], wp[:, 2 * C:]
    bq, bk, bv = bp[:C], bp[C:2 * C], bp[2 * C:]
    scale = p['scale']

    def kern(x_ref, wq_ref, bq_ref, wk_ref, bk_ref, wv_ref, bv_ref,
             wo_ref, bo_ref, o_ref):
        xv = x_ref[0].astype(jnp.float32)                # (L, C)
        xb = xv.astype(jnp.bfloat16)
        q = jnp.dot(xb, wq_ref[...], preferred_element_type=jnp.float32) + bq_ref[...]
        k = jnp.dot(xb, wk_ref[...], preferred_element_type=jnp.float32) + bk_ref[...]
        v = jnp.dot(xb, wv_ref[...], preferred_element_type=jnp.float32) + bv_ref[...]
        attn = jax.lax.dot_general(
            q.astype(jnp.bfloat16), k.astype(jnp.bfloat16),
            (((1,), (1,)), ((), ())), preferred_element_type=jnp.float32) * scale
        attn = attn - jnp.max(attn, axis=-1, keepdims=True)
        attn = jnp.exp(attn)
        attn = attn / jnp.sum(attn, axis=-1, keepdims=True)
        r = jnp.dot(attn.astype(jnp.bfloat16), v.astype(jnp.bfloat16),
                    preferred_element_type=jnp.float32)
        out = jnp.dot(r.astype(jnp.bfloat16), wo_ref[...],
                      preferred_element_type=jnp.float32) + bo_ref[...]
        o_ref[0] = (out + xv).astype(o_ref.dtype)

    cw = lambda a: a.astype(jnp.bfloat16)
    cb = lambda a: a.reshape(1, C).astype(jnp.float32)
    out = pl.pallas_call(
        kern,
        grid=(B,),
        in_specs=[pl.BlockSpec((1, L, C), lambda i: (i, 0, 0))]
                 + [pl.BlockSpec((C, C), lambda i: (0, 0)),
                    pl.BlockSpec((1, C), lambda i: (0, 0))] * 4,
        out_specs=pl.BlockSpec((1, L, C), lambda i: (i, 0, 0)),
        out_shape=jax.ShapeDtypeStruct((B, L, C), jnp.float32),
        compiler_params=pltpu.CompilerParams(
            dimension_semantics=("parallel",),
            vmem_limit_bytes=32 * 1024 * 1024),
    )(xl, cw(wq), cb(bq), cw(wk), cb(bk), cw(wv), cb(bv),
      cw(p['out']['w']), cb(p['out']['b']))
    return out.reshape(B, H, W, C)


# ----------------------------------------------------------------------------
# Strided convs routed through the same stride-1 fused kernel
# ----------------------------------------------------------------------------
def downsample_conv(x, w, b):
    """3x3, stride-2, pad-1 conv via polyphase channel stacking."""
    B, H, W, C = x.shape
    Cout = w.shape[-1]
    xp = jnp.pad(x, ((0, 0), (1, 1), (1, 1), (0, 0)))
    phases = [xp[:, py::2, px::2, :] for py in (0, 1) for px in (0, 1)]
    xs = jnp.concatenate(phases, axis=-1)                 # (B, H//2+1, W//2+1, 4C)
    wz = jnp.zeros((4, 4, C, Cout), w.dtype).at[:3, :3].set(w)
    rows = []
    for dy in (0, 1):
        cols = []
        for dx in (0, 1):
            sub = [wz[2 * dy + py, 2 * dx + px] for py in (0, 1) for px in (0, 1)]
            cols.append(jnp.concatenate(sub, axis=0))     # (4C, Cout)
        rows.append(jnp.stack(cols, axis=0))
    w2 = jnp.stack(rows, axis=0)                          # (2, 2, 4C, Cout)
    return fused_conv(xs, w2, b, pad=0)


def upsample_conv(x, w, b):
    """ConvTranspose2d(k=4, s=2, p=1) as zero-stuffed stride-1 conv."""
    # TODO(synk): a polyphase decomposition would save ~4x MACs; negligible at 8x8.
    B, H, W, C = x.shape
    Hu, Wu = (H - 1) * 2 + 1, (W - 1) * 2 + 1
    xu = jnp.zeros((B, Hu, Wu, C), x.dtype).at[:, ::2, ::2, :].set(x)
    wf = jnp.transpose(jnp.flip(w, axis=(2, 3)), (2, 3, 0, 1))  # (Cin,Cout,4,4)->(4,4,Cin,Cout)
    return fused_conv(xu, wf, b, pad=2)


# ----------------------------------------------------------------------------
# Parameter init (deterministic, synthetic).  Weight layouts match the kernels:
# conv: (KH, KW, Cin, Cout); linear: (in, out); conv-transpose: torch (Cin, Cout, 4, 4)
# ----------------------------------------------------------------------------
class ParamGen:
    def __init__(self, key):
        self.key = key

    def next(self, shape, fan_in=None):
        self.key, sub = jax.random.split(self.key)
        scale = (1.0 / math.sqrt(fan_in)) if fan_in else 0.02
        return (scale * jax.random.normal(sub, shape)).astype(jnp.float32)


def init_conv(pg, cout, cin, kh, kw):
    fan = cin * kh * kw
    return dict(w=pg.next((kh, kw, cin, cout), fan), b=pg.next((cout,), fan))


def init_linear(pg, out_f, in_f):
    return dict(w=pg.next((in_f, out_f), in_f), b=pg.next((out_f,), in_f))


def init_gn(c):
    return dict(g=jnp.ones((c,), jnp.float32), b=jnp.zeros((c,), jnp.float32))


def init_resblock(pg, cin, cout, tch, n_groups=32):
    p = dict(norm1=init_gn(cin), conv1=init_conv(pg, cout, cin, 3, 3),
             norm2=init_gn(cout), conv2=init_conv(pg, cout, cout, 3, 3),
             time=init_linear(pg, cout, tch), n_groups=n_groups)
    if cin != cout:
        p['shortcut'] = init_conv(pg, cout, cin, 1, 1)
    return p


def init_attn(pg, c):
    return dict(proj=init_linear(pg, 3 * c, c), out=init_linear(pg, c, c),
                scale=c ** (-0.5))


def init_unet(key, image_channels=3, image_shape=(16, 16), n_channels=32,
              ch_mults=(1, 2), is_attn=(False, True), n_blocks=1, embedding_dim=64):
    pg = ParamGen(key)
    n_res = len(ch_mults)
    tch = n_channels * 4
    params = {}
    config = dict(n_channels=n_channels)

    params['image_proj'] = init_conv(pg, n_channels, image_channels, 3, 3)
    params['time_emb'] = dict(lin1=init_linear(pg, tch, tch // 4),
                              lin2=init_linear(pg, tch, tch))

    out_h, out_w = image_shape
    temp_h, temp_w = out_h, out_w
    sentence_encoders = {}
    num_channels = n_channels
    for i in range(n_res):
        num_channels *= ch_mults[i]
        se = dict(conv=init_conv(pg, num_channels, 1, 3, 3))
        if embedding_dim != temp_h * temp_w:
            se['lin'] = init_linear(pg, temp_h * temp_w, embedding_dim)
        else:
            se['lin'] = None
        sentence_encoders[(temp_h, temp_w)] = se
        temp_h //= 2
        temp_w //= 2
    params['sentence_encoders'] = sentence_encoders

    down, down_shapes = [], []
    out_c = in_c = n_channels
    for i in range(n_res):
        out_c = in_c * ch_mults[i]
        for _ in range(n_blocks):
            blk = dict(res=init_resblock(pg, in_c, out_c, tch))
            if is_attn[i]:
                blk['attn'] = init_attn(pg, out_c)
            down.append(('down', blk))
            in_c = out_c
            down_shapes.append((out_h, out_w))
        if i < n_res - 1:
            down.append(('downsample', init_conv(pg, in_c, in_c, 3, 3)))
            down_shapes.append((out_h, out_w))
            out_h //= 2
            out_w //= 2
    params['down'] = down
    config['down_shapes'] = down_shapes

    params['middle'] = dict(res1=init_resblock(pg, out_c, out_c, tch),
                            attn=init_attn(pg, out_c),
                            res2=init_resblock(pg, out_c, out_c, tch))

    up, up_shapes = [], []
    in_c = out_c
    for i in reversed(range(n_res)):
        out_c = in_c
        for _ in range(n_blocks):
            blk = dict(res=init_resblock(pg, in_c + out_c, out_c, tch))
            if is_attn[i]:
                blk['attn'] = init_attn(pg, out_c)
            up.append(('up', blk))
            up_shapes.append((out_h, out_w))
        out_c = in_c // ch_mults[i]
        blk = dict(res=init_resblock(pg, in_c + out_c, out_c, tch))
        if is_attn[i]:
            blk['attn'] = init_attn(pg, out_c)
        up.append(('up', blk))
        up_shapes.append((out_h, out_w))
        in_c = out_c
        if i > 0:
            fan = in_c * 4 * 4
            up.append(('upsample', dict(w=pg.next((in_c, in_c, 4, 4), fan),
                                        b=pg.next((in_c,), fan))))
            up_shapes.append((out_h, out_w))
            out_h *= 2
            out_w *= 2
    params['up'] = up
    config['up_shapes'] = up_shapes

    params['norm'] = init_gn(n_channels)
    params['final'] = init_conv(pg, image_channels, n_channels, 3, 3)
    return params, config


# ----------------------------------------------------------------------------
# Forward pass (mirrors UNet.forward, activations kept in NHWC)
# ----------------------------------------------------------------------------
def time_embedding(t, p, tch):
    half = tch // 8
    freq = jnp.exp(jnp.arange(half, dtype=jnp.float32)
                   * -(math.log(10000.0) / (half - 1)))
    emb = t[:, None] * freq[None, :]
    emb = jnp.concatenate([jnp.sin(emb), jnp.cos(emb)], axis=1)   # (B, tch//4)
    emb = linear_fused(emb, p['lin1']['w'], p['lin1']['b'], swish_out=True)
    emb = linear_fused(emb, p['lin2']['w'], p['lin2']['b'])
    return emb


def sentence_block(se, p, out_h, out_w):
    B = se.shape[0]
    if p['lin'] is not None:
        e = linear_fused(se, p['lin']['w'], p['lin']['b'], swish_out=True)
        act_in = False
    else:
        e = se
        act_in = True          # swish fused into the conv kernel input
    e = e.reshape(B, out_h, out_w, 1)
    return fused_conv(e, p['conv']['w'], p['conv']['b'], pad=1, act_in=act_in)


def residual_block(x, t_emb, sent, p):
    cout = p['conv1']['w'].shape[-1]
    use_sent = sent.shape[-1] == cout
    h = fused_conv(x, p['conv1']['w'], p['conv1']['b'], pad=1,
                   gn=(p['norm1']['g'], p['norm1']['b'], p['n_groups']),
                   sent=sent if use_sent else None,
                   time=(t_emb, p['time']['w'], p['time']['b']))
    # TODO(synk): nn.Dropout treated as identity (eval-mode forward).
    sc = (fused_conv(x, p['shortcut']['w'], p['shortcut']['b'], pad=0)
          if 'shortcut' in p else x)
    return fused_conv(h, p['conv2']['w'], p['conv2']['b'], pad=1,
                      gn=(p['norm2']['g'], p['norm2']['b'], p['n_groups']),
                      res=sc)


def res_attn_block(x, t_emb, sent, blk):
    x = residual_block(x, t_emb, sent, blk['res'])
    if 'attn' in blk:
        x = attention_block(x, blk['attn'])
    return x


def unet_forward(params, x, t, sentence_embedding, config):
    tch = config['n_channels'] * 4
    t_emb = time_embedding(t, params['time_emb'], tch)
    x = jnp.transpose(x, (0, 2, 3, 1))           # NCHW -> NHWC once at the boundary
    x = fused_conv(x, params['image_proj']['w'], params['image_proj']['b'], pad=1)

    sent_embs = {}
    for shape, sp in params['sentence_encoders'].items():
        sent_embs[shape] = sentence_block(sentence_embedding, sp, shape[0], shape[1])

    h = [x]
    for i, (kind, p) in enumerate(params['down']):
        shape = config['down_shapes'][i]
        if kind == 'down':
            x = res_attn_block(x, t_emb, sent_embs[shape], p)
        else:
            x = downsample_conv(x, p['w'], p['b'])
        h.append(x)

    mid_sent = sent_embs[config['down_shapes'][-1]]
    x = residual_block(x, t_emb, mid_sent, params['middle']['res1'])
    x = attention_block(x, params['middle']['attn'])
    x = residual_block(x, t_emb, mid_sent, params['middle']['res2'])

    for idx, (kind, p) in enumerate(params['up']):
        shape = config['up_shapes'][idx]
        if kind == 'upsample':
            x = upsample_conv(x, p['w'], p['b'])
        else:
            s = h.pop()
            x = jnp.concatenate([x, s], axis=-1)
            x = res_attn_block(x, t_emb, sent_embs[shape], p)

    x = fused_conv(x, params['final']['w'], params['final']['b'], pad=1,
                   gn=(params['norm']['g'], params['norm']['b'], 8))
    return jnp.transpose(x, (0, 3, 1, 2))        # back to NCHW


# ----------------------------------------------------------------------------
if __name__ == "__main__":
    key = jax.random.PRNGKey(0)
    k1, k2, k3, kp = jax.random.split(key, 4)

    B = 2
    image_channels = 3
    image_shape = (16, 16)
    embedding_dim = 64

    params, config = init_unet(kp, image_channels=image_channels,
                               image_shape=image_shape, n_channels=32,
                               ch_mults=(1, 2), is_attn=(False, True),
                               n_blocks=1, embedding_dim=embedding_dim)

    x = jax.random.normal(k1, (B, image_channels) + image_shape, jnp.float32)
    t = jax.random.uniform(k2, (B,), jnp.float32) * 100.0
    sentence = jax.random.normal(k3, (B, embedding_dim), jnp.float32)

    out = unet_forward(params, x, t, sentence, config)
    out = jax.block_until_ready(out)
    assert out.shape == (B, image_channels) + image_shape
    assert bool(jnp.all(jnp.isfinite(out)))
    print("KERNEL_OK")
</pallas_src>

<mosaic_0001>
module attributes {stable_mosaic.version = 11 : i64} {
  func.func @kern(%arg0: i32, %arg1: memref<2x32xf32, #tpu.memory_space<vmem>>, %arg2: memref<32x128xbf16, #tpu.memory_space<vmem>>, %arg3: memref<1x128xf32, #tpu.memory_space<vmem>>, %arg4: memref<2x128xf32, #tpu.memory_space<vmem>>) attributes {dimension_semantics = [#tpu.dimension_semantics<arbitrary>], iteration_bounds = array<i64: 1>, scalar_prefetch = 0 : i64, scratch_operands = 0 : i64, tpu.core_type = #tpu.core_type<tc>, window_params = [{pipeline_mode = #tpu.pipeline_mode<synchronous>, transform_indices = @transform_0, window_bounds = array<i64: 2, 32>}, {pipeline_mode = #tpu.pipeline_mode<synchronous>, transform_indices = @transform_1, window_bounds = array<i64: 32, 128>}, {pipeline_mode = #tpu.pipeline_mode<synchronous>, transform_indices = @transform_2, window_bounds = array<i64: 1, 128>}, {pipeline_mode = #tpu.pipeline_mode<synchronous>, transform_indices = @transform_3, window_bounds = array<i64: 2, 128>}]} {
    %c0 = arith.constant 0 : index
    %c0_0 = arith.constant 0 : index
    %0 = vector.load %arg1[%c0, %c0_0] : memref<2x32xf32, #tpu.memory_space<vmem>>, vector<2x32xf32>
    %1 = arith.truncf %0 : vector<2x32xf32> to vector<2x32xbf16>
    %c0_1 = arith.constant 0 : index
    %c0_2 = arith.constant 0 : index
    %2 = vector.load %arg2[%c0_1, %c0_2] : memref<32x128xbf16, #tpu.memory_space<vmem>>, vector<32x128xbf16>
    %cst = arith.constant dense<0.000000e+00> : vector<2x128xf32>
    %3 = tpu.matmul %1, %2, %cst {dimension_numbers = #tpu.dot_dimension_numbers<[1], [0], [0], [1], [0, 0, 1, 1], [], []>} : vector<2x32xbf16>, vector<32x128xbf16>, vector<2x128xf32> -> vector<2x128xf32>
    %c0_3 = arith.constant 0 : index
    %c0_4 = arith.constant 0 : index
    %4 = vector.load %arg3[%c0_3, %c0_4] : memref<1x128xf32, #tpu.memory_space<vmem>>, vector<1x128xf32>
    %5 = vector.broadcast %4 : vector<1x128xf32> to vector<2x128xf32>
    %6 = arith.addf %3, %5 : vector<2x128xf32>
    %7 = arith.negf %6 : vector<2x128xf32>
    %8 = math.exp %7 : vector<2x128xf32>
    %cst_5 = arith.constant 1.000000e+00 : f32
    %9 = vector.broadcast %cst_5 : f32 to vector<2x128xf32>
    %10 = arith.addf %9, %8 : vector<2x128xf32>
    %11 = arith.divf %9, %10 : vector<2x128xf32>
    %12 = arith.mulf %6, %11 : vector<2x128xf32>
    %c0_6 = arith.constant 0 : index
    %c0_7 = arith.constant 0 : index
    %13 = vector.load %arg4[%c0_6, %c0_7] : memref<2x128xf32, #tpu.memory_space<vmem>>, vector<2x128xf32>
    tpu.vector_store %arg4[%c0_6, %c0_7], %12 {strides = array<i32>} : memref<2x128xf32, #tpu.memory_space<vmem>>, vector<2x128xf32>,
    return
  }
  func.func @transform_0(%arg0: i32) -> (i32, i32) {
    %c0_i32 = arith.constant 0 : i32
    %c0_i32_0 = arith.constant 0 : i32
    %c0_i32_1 = arith.constant 0 : i32
    return %c0_i32, %c0_i32_0 : i32, i32
  }
  func.func @transform_1(%arg0: i32) -> (i32, i32) {
    %c0_i32 = arith.constant 0 : i32
    %c0_i32_0 = arith.constant 0 : i32
    %c0_i32_1 = arith.constant 0 : i32
    return %c0_i32, %c0_i32_0 : i32, i32
  }
  func.func @transform_2(%arg0: i32) -> (i32, i32) {
    %c0_i32 = arith.constant 0 : i32
    %c0_i32_0 = arith.constant 0 : i32
    %c0_i32_1 = arith.constant 0 : i32
    return %c0_i32, %c0_i32_0 : i32, i32
  }
  func.func @transform_3(%arg0: i32) -> (i32, i32) {
    %c0_i32 = arith.constant 0 : i32
    %c0_i32_0 = arith.constant 0 : i32
    %c0_i32_1 = arith.constant 0 : i32
    return %c0_i32, %c0_i32_0 : i32, i32
  }
}

</mosaic_0001>

<llo_original>
// kernel: tpu_custom_call.1
$region0: #{tpu_custom_call.1}
  #allocation0 [shape = 'u32[]', space=smem, size = 0x4, offset = 0x4, fixed_abs, tag = 'smem constant byte address 0x4 - core index']
  #allocation1 [shape = 'u32[144,128]{1,0:T(1,128)}', space=vmem, size = 0x12000, scoped, tag = 'internal scratch']
  %s0 = inlined_call_operand.hbm [shape: f32[2,32], index: 0, kind: input, shape index: {}]
  %s1 = inlined_call_operand.hbm [shape: bf16[32,128], index: 1, kind: input, shape index: {}]
  %s2 = inlined_call_operand.vmem [shape: f32[1,128], index: 2, kind: input, shape index: {}]
  %s3 = inlined_call_operand.hbm [shape: f32[2,128], index: 3, kind: output, shape index: {}]
  %s4 = sld [smem:[#allocation0]]
  $region30: #{tpu_custom_call.1} parent=0
    _
  %s6 = ssub.s32 1, %s4
  %s7 = scalar_select 0, %s6, %s4
  $region1: #{tpu_custom_call.1} parent=0
    #allocation2 [shape = 'u8[1024]{0}', space=vmem, size = 0x400, scoped, tag = 'input window, operand 0, single buffered']
    #allocation3 [shape = 's32[1]{0}', space=sflag, size = 0x4, scoped, tag = 'scoped memory for tpu_custom_call.1']
    #allocation4 [shape = 's32[1]{0}', space=sflag, size = 0x4, scoped, tag = 'scoped memory for tpu_custom_call.1']
    #allocation5 [shape = 'u8[8192]{0}', space=vmem, size = 0x2000, scoped, tag = 'input window, operand 1, single buffered']
    #allocation6 [shape = 's32[1]{0}', space=sflag, size = 0x4, scoped, tag = 'scoped memory for tpu_custom_call.1']
    #allocation7 [shape = 'u8[1024]{0}', space=vmem, size = 0x400, scoped, tag = 'output window, operand 0, single buffered']
    %8 = vsyncpa [#allocation3], 0
    %9 = vsyncpa [#allocation6], 0
    %10 = vsyncpa [#allocation4], 0
    // Predicated region
    $region2: #{tpu_custom_call.1} parent=1 // pred_check
      _
    $region3: #{tpu_custom_call.1} parent=1 // pred_check_branch
      %12 = sbr.rel (0) target = $region5
    $region4: #{tpu_custom_call.1} parent=1 // pred_region
      %s14 = ssub.s32 32, 32
      %15 = vsyncadd [#allocation3], %s14
      %s17 = sshll.u32 [#allocation2], 4
      %s18 = int_to_ptr.vmem [resolvable:$true] %s17
      %20 = dma.hbm_to_vmem [thread:$0]  %s0, 32, %s18, [#allocation3]
    $region5: #{tpu_custom_call.1} parent=1 // pred_fallthru
      _
    // Predicated region
    $region6: #{tpu_custom_call.1} parent=1 // pred_check
      _
    $region7: #{tpu_custom_call.1} parent=1 // pred_check_branch
      %22 = sbr.rel (0) target = $region9
    $region8: #{tpu_custom_call.1} parent=1 // pred_region
      %s24 = ssub.s32 256, 256
      %25 = vsyncadd [#allocation6], %s24
      %s26 = sshll.u32 [#allocation5], 4
      %s27 = int_to_ptr.vmem [resolvable:$true] %s26
      %32 = dma.hbm_to_vmem [thread:$0]  %s1, 256, %s27, [#allocation6], 64, 64, 4
    $region9: #{tpu_custom_call.1} parent=1 // pred_fallthru
      _
    // Predicated region
    $region10: #{tpu_custom_call.1} parent=1 // pred_check
      _
    $region11: #{tpu_custom_call.1} parent=1 // pred_check_branch
      %34 = sbr.rel (0) target = $region13
    $region12: #{tpu_custom_call.1} parent=1 // pred_region
      _
    $region13: #{tpu_custom_call.1} parent=1 // pred_fallthru
      _
    // Predicated region
    $region14: #{tpu_custom_call.1} parent=1 // pred_check
      _
    $region15: #{tpu_custom_call.1} parent=1 // pred_check_branch
      %36 = sbr.rel (0) target = $region17
    $region16: #{tpu_custom_call.1} parent=1 // pred_region
      %37 = dma.done [#allocation3], 32
    $region17: #{tpu_custom_call.1} parent=1 // pred_fallthru
      _
    // Predicated region
    $region18: #{tpu_custom_call.1} parent=1 // pred_check
      _
    $region19: #{tpu_custom_call.1} parent=1 // pred_check_branch
      %39 = sbr.rel (0) target = $region21
    $region20: #{tpu_custom_call.1} parent=1 // pred_region
      %40 = dma.done [#allocation6], 256
    $region21: #{tpu_custom_call.1} parent=1 // pred_fallthru
      _
    %v42 = vld [vmem:[#allocation2] sm:$0x3]
    %v43 = vpack.c.bf16 %v42, %v42
    %v44 = vld [vmem:[#allocation5] sm:$0xf]
    %v45 = vld [vmem:[#allocation5 + $0x4] sm:$0xf]
    %v46 = vld [vmem:[#allocation5 + $0x8] sm:$0xf]
    %v47 = vld [vmem:[#allocation5 + $0xc] sm:$0xf]
    %v48 = vld [vmem:[%s2] sm:$0x1]
    %v50 = vlaneseq
    %v51 = vshrl.u32 %v50, 7
    %v52 = vsub.s32 0, %v51
    %v53 = vrot.slane %v48, %v52
    %v59 = vunpack.c.l.b16 %v44
    %v60 = vunpack.c.l.b16 %v45
    %v61 = vunpack.c.l.b16 %v46
    %v62 = vunpack.c.l.b16 %v47
    %v63 = vpack.c.b16 %v60, %v59
    %v64 = vpack.c.b16 %v62, %v61
    %vm67 = vcmask 261120
    %v69 = vsel %vm67, %v43, 0
    %71 = vmatprep.subr.bf16.mxu0 0
    %72 = vmatpush1.bf16.msra.mxu0 %v63
    %73 = vmatprep.subr.bf16.mxu0 0
    %74 = vmatpush1.bf16.msra.mxu0 %v64
    %75 = vmatprep.subr.bf16.mxu0 0
    %76 = vmatpush1.bf16.msra.mxu0 0
    %77 = vmatprep.subr.bf16.mxu0 0
    %78 = vmatpush1.bf16.msra.mxu0 0
    %79 = vmatprep.subr.bf16.mxu0 0
    %80 = vmatpush1.bf16.msra.mxu0 0
    %81 = vmatprep.subr.bf16.mxu0 0
    %82 = vmatpush1.bf16.msra.mxu0 0
    %83 = vmatprep.subr.bf16.mxu0 0
    %84 = vmatpush1.bf16.msra.mxu0 0
    %85 = vmatprep.subr.bf16.mxu0 0
    %86 = vmatpush1.bf16.msra.mxu0 0
    %87 = vmatprep.subr.bf16.mxu0 0
    %88 = vmatpush1.bf16.msra.mxu0 0
    %89 = vmatprep.subr.bf16.mxu0 0
    %90 = vmatpush1.bf16.msra.mxu0 0
    %91 = vmatprep.subr.bf16.mxu0 0
    %92 = vmatpush1.bf16.msra.mxu0 0
    %93 = vmatprep.subr.bf16.mxu0 0
    %94 = vmatpush1.bf16.msra.mxu0 0
    %95 = vmatprep.subr.bf16.mxu0 0
    %96 = vmatpush1.bf16.msra.mxu0 0
    %97 = vmatprep.subr.bf16.mxu0 0
    %98 = vmatpush1.bf16.msra.mxu0 0
    %99 = vmatprep.subr.bf16.mxu0 0
    %100 = vmatpush1.bf16.msra.mxu0 0
    %101 = vmatprep.subr.bf16.mxu0 0
    %102 = vmatpush1.bf16.msra.mxu0 0
    %103 = vmatprep.mubr.bf16.mxu0 0
    %104 = vmatmul.mubr.bf16.gmra.mrb[0].mxu0 %v69
    %v105 = vpop.f32.mrb[0].mxu0
    %v106 = vadd.f32 %v53, %v105
    %v107 = vpop.f32.mrb[0].mxu0
    %v108 = vpop.f32.mrb[0].mxu0
    %v109 = vpop.f32.mrb[0].mxu0
    %110 = vdwg.mxu0
    %v111 = vxor.u32 %v106, 2147483648
    %v112 = vmul.f32 %v111, 1.442695
    %v113 = vpow.pop %v112
    %v114 = vadd.f32 %v113, 1.0
    %v115 = vrcp.pop %v114
    %v116 = vmul.f32 1.0, %v115
    %v117 = vmul.f32 %v106, %v116
    %118 = vst [vmem:[#allocation7] sm:$0x3] %v117
    // Predicated region
    $region22: #{tpu_custom_call.1} parent=1 // pred_check
      _
    $region23: #{tpu_custom_call.1} parent=1 // pred_check_branch
      %120 = sbr.rel (0) target = $region25
    $region24: #{tpu_custom_call.1} parent=1 // pred_region
      %s122 = ssub.s32 32, 32
      %123 = vsyncadd [#allocation4], %s122
      %s125 = sshll.u32 [#allocation7], 4
      %s126 = int_to_ptr.vmem [resolvable:$true] %s125
      %128 = dma.vmem_to_hbm [thread:$0]  %s126, 32, %s3, [#allocation4]
    $region25: #{tpu_custom_call.1} parent=1 // pred_fallthru
      _
    // Predicated region
    $region26: #{tpu_custom_call.1} parent=1 // pred_check
      _
    $region27: #{tpu_custom_call.1} parent=1 // pred_check_branch
      %130 = sbr.rel (0) target = $region29
    $region28: #{tpu_custom_call.1} parent=1 // pred_region
      %131 = dma.done [#allocation4], 32
    $region29: #{tpu_custom_call.1} parent=1 // pred_fallthru
      _
    %132 = vsyncpa [#allocation3], 1
    %133 = vsyncpa [#allocation6], 1
    %134 = vsyncpa [#allocation4], 1

</llo_original>
